<compile_context>
chip_gen: v5e
topology: v5e:2x2
jax: 0.10.0
libtpu: 0.0.40
codegen_flags: <defaults>
</compile_context>

<pallas_src>
import math
import functools

import jax
import jax.numpy as jnp
from jax.experimental import pallas as pl
from jax.experimental.pallas import tpu as pltpu


def _round_up(x, m):
    return (x + m - 1) // m * m


# --------------------- stage 1: support = features @ weight -----------------

def _support_kernel(feat_ref, w_ref, sup_ref):
    sup_ref[...] = jnp.dot(
        feat_ref[...], w_ref[...], preferred_element_type=jnp.float32
    ).astype(sup_ref.dtype)


# --------------------- stage 2: out = adj @ support + bias ------------------

def _aggregate_kernel(adj_ref, sup_ref, b_ref, out_ref, acc_ref):
    k = pl.program_id(1)

    @pl.when(k == 0)
    def _():
        acc_ref[...] = jnp.zeros_like(acc_ref)

    acc_ref[...] += jnp.dot(
        adj_ref[...], sup_ref[...], preferred_element_type=jnp.float32
    )

    @pl.when(k == pl.num_programs(1) - 1)
    def _():
        out_ref[...] = (acc_ref[...] + b_ref[...]).astype(out_ref.dtype)


@functools.partial(jax.jit, static_argnames=("tile_m", "tile_k"))
def graph_convolution(adj, features, weight, bias=None, *, tile_m=256, tile_k=512):
    """Pallas GCN forward: adj @ (features @ weight) + bias."""
    n_nodes, n_nodes2 = adj.shape
    assert n_nodes == n_nodes2
    f_in, f_out = weight.shape
    assert features.shape == (n_nodes, f_in)

    if bias is None:
        bias = jnp.zeros((f_out,), jnp.float32)

    # Tile sizes clamped to the problem and kept layout-legal
    # (sublane tiles multiple of 8, lane / contraction tiles multiple of 128).
    tm = min(tile_m, _round_up(n_nodes, 8))
    tk = min(tile_k, _round_up(n_nodes, 128))
    n_pad_m = _round_up(n_nodes, tm)       # padded rows of adj / output
    n_pad_k = _round_up(n_nodes, tk)       # padded contraction dim (cols of adj)
    f_out_pad = _round_up(f_out, 128)      # lane-dense output columns

    # bf16 operands for the MXU (explicit zero padding keeps K-tiling exact);
    # accumulation inside the kernels is f32 via preferred_element_type.
    feat_p = jnp.pad(features, ((0, n_pad_k - n_nodes), (0, 0))).astype(jnp.bfloat16)
    w_p = jnp.pad(weight, ((0, 0), (0, f_out_pad - f_out))).astype(jnp.bfloat16)
    adj_p = jnp.pad(
        adj, ((0, n_pad_m - n_nodes), (0, n_pad_k - n_nodes))
    ).astype(jnp.bfloat16)
    b_p = jnp.pad(bias.astype(jnp.float32), (0, f_out_pad - f_out)).reshape(
        1, f_out_pad
    )

    # ---- stage 1: support = features @ weight (row-tiled, fully parallel) ----
    support = pl.pallas_call(
        _support_kernel,
        out_shape=jax.ShapeDtypeStruct((n_pad_k, f_out_pad), jnp.bfloat16),
        grid_spec=pltpu.PrefetchScalarGridSpec(
            num_scalar_prefetch=0,
            grid=(n_pad_k // tk,),
            in_specs=[
                pl.BlockSpec((tk, f_in), lambda i: (i, 0)),
                pl.BlockSpec((f_in, f_out_pad), lambda i: (0, 0)),
            ],
            out_specs=pl.BlockSpec((tk, f_out_pad), lambda i: (i, 0)),
        ),
        compiler_params=pltpu.CompilerParams(
            dimension_semantics=("parallel",),
        ),
        cost_estimate=pl.CostEstimate(
            flops=2 * n_pad_k * f_in * f_out_pad,
            transcendentals=0,
            bytes_accessed=2 * n_pad_k * f_in
            + 2 * f_in * f_out_pad
            + 2 * n_pad_k * f_out_pad,
        ),
    )(feat_p, w_p)

    # ---- stage 2: out = adj @ support + bias (M parallel, K innermost) ----
    out = pl.pallas_call(
        _aggregate_kernel,
        out_shape=jax.ShapeDtypeStruct((n_pad_m, f_out_pad), jnp.float32),
        grid_spec=pltpu.PrefetchScalarGridSpec(
            num_scalar_prefetch=0,
            grid=(n_pad_m // tm, n_pad_k // tk),
            in_specs=[
                # adj tile: [tm, tk]
                pl.BlockSpec((tm, tk), lambda i, k: (i, k)),
                # support K-slab: [tk, F_out_pad]
                pl.BlockSpec((tk, f_out_pad), lambda i, k: (k, 0)),
                # bias: [1, F_out_pad]
                pl.BlockSpec((1, f_out_pad), lambda i, k: (0, 0)),
            ],
            out_specs=pl.BlockSpec((tm, f_out_pad), lambda i, k: (i, 0)),
            scratch_shapes=[pltpu.VMEM((tm, f_out_pad), jnp.float32)],
        ),
        compiler_params=pltpu.CompilerParams(
            dimension_semantics=("parallel", "arbitrary"),
        ),
        cost_estimate=pl.CostEstimate(
            flops=2 * n_pad_m * n_pad_k * f_out_pad,
            transcendentals=0,
            bytes_accessed=2 * n_pad_m * n_pad_k
            + 2 * n_pad_k * f_out_pad
            + 4 * n_pad_m * f_out_pad
            + 4 * f_out_pad,
        ),
    )(adj_p, support, b_p)

    return out[:n_nodes, :f_out]


def init_params(key, in_features, out_features):
    """Mirror GraphConvolution.reset_parameters (uniform(-stdv, stdv))."""
    stdv = 1.0 / math.sqrt(out_features)
    kw, kb = jax.random.split(key)
    weight = jax.random.uniform(
        kw, (in_features, out_features), jnp.float32, minval=-stdv, maxval=stdv
    )
    bias = jax.random.uniform(
        kb, (out_features,), jnp.float32, minval=-stdv, maxval=stdv
    )
    return weight, bias


if __name__ == "__main__":
    key = jax.random.PRNGKey(0)
    k_adj, k_feat, k_param = jax.random.split(key, 3)

    # Small, deliberately non-128-multiple shapes to exercise the padding path.
    n_nodes = 200       # N
    in_features = 96    # F_in
    out_features = 64   # F_out

    # Dense row-normalized adjacency (synthetic, dense).
    adj = jax.random.uniform(k_adj, (n_nodes, n_nodes), jnp.float32)
    adj = adj / jnp.sum(adj, axis=1, keepdims=True)

    features = jax.random.normal(k_feat, (n_nodes, in_features), jnp.float32)
    weight, bias = init_params(k_param, in_features, out_features)

    out = graph_convolution(adj, features, weight, bias)
    out = jax.block_until_ready(out)
    assert out.shape == (n_nodes, out_features)

    # Reference 1: same bf16 quantization as the kernel (structural check).
    sup_q = jnp.dot(
        features.astype(jnp.bfloat16),
        weight.astype(jnp.bfloat16),
        preferred_element_type=jnp.float32,
    ).astype(jnp.bfloat16)
    ref_q = (
        jnp.dot(adj.astype(jnp.bfloat16), sup_q, preferred_element_type=jnp.float32)
        + bias
    )
    assert jnp.allclose(out, ref_q, atol=5e-3, rtol=5e-3), "mismatch vs bf16 reference"

    # Reference 2: pure f32 math (semantics of the torch module), loose bf16 tolerance.
    ref = adj @ (features @ weight) + bias
    assert jnp.allclose(out, ref, atol=2.5e-2, rtol=2.5e-2), "mismatch vs f32 reference"

    print("KERNEL_OK")
</pallas_src>

<mosaic_0001>
module attributes {stable_mosaic.version = 11 : i64} {
  func.func @_support_kernel(%arg0: i32, %arg1: memref<256x96xbf16, #tpu.memory_space<vmem>>, %arg2: memref<96x128xbf16, #tpu.memory_space<vmem>>, %arg3: memref<256x128xbf16, #tpu.memory_space<vmem>>) attributes {dimension_semantics = [#tpu.dimension_semantics<parallel>], iteration_bounds = array<i64: 1>, scalar_prefetch = 0 : i64, scratch_operands = 0 : i64, tpu.core_type = #tpu.core_type<tc>, window_params = [{transform_indices = @transform_0, window_bounds = array<i64: 256, 96>}, {pipeline_mode = #tpu.pipeline_mode<synchronous>, transform_indices = @transform_1, window_bounds = array<i64: 96, 128>}, {transform_indices = @transform_2, window_bounds = array<i64: 256, 128>}]} {
    %c0 = arith.constant 0 : index
    %c0_0 = arith.constant 0 : index
    %0 = vector.load %arg1[%c0, %c0_0] : memref<256x96xbf16, #tpu.memory_space<vmem>>, vector<256x96xbf16>
    %c0_1 = arith.constant 0 : index
    %c0_2 = arith.constant 0 : index
    %1 = vector.load %arg2[%c0_1, %c0_2] : memref<96x128xbf16, #tpu.memory_space<vmem>>, vector<96x128xbf16>
    %cst = arith.constant dense<0.000000e+00> : vector<256x128xf32>
    %2 = tpu.matmul %0, %1, %cst {dimension_numbers = #tpu.dot_dimension_numbers<[1], [0], [0], [1], [0, 0, 1, 1], [], []>} : vector<256x96xbf16>, vector<96x128xbf16>, vector<256x128xf32> -> vector<256x128xf32>
    %3 = arith.truncf %2 : vector<256x128xf32> to vector<256x128xbf16>
    %c0_3 = arith.constant 0 : index
    %c0_4 = arith.constant 0 : index
    %4 = vector.load %arg3[%c0_3, %c0_4] : memref<256x128xbf16, #tpu.memory_space<vmem>>, vector<256x128xbf16>
    tpu.vector_store %arg3[%c0_3, %c0_4], %3 {strides = array<i32>} : memref<256x128xbf16, #tpu.memory_space<vmem>>, vector<256x128xbf16>,
    return
  }
  func.func @transform_0(%arg0: i32) -> (i32, i32) {
    %c0_i32 = arith.constant 0 : i32
    %c0_i32_0 = arith.constant 0 : i32
    return %arg0, %c0_i32 : i32, i32
  }
  func.func @transform_1(%arg0: i32) -> (i32, i32) {
    %c0_i32 = arith.constant 0 : i32
    %c0_i32_0 = arith.constant 0 : i32
    %c0_i32_1 = arith.constant 0 : i32
    return %c0_i32, %c0_i32_0 : i32, i32
  }
  func.func @transform_2(%arg0: i32) -> (i32, i32) {
    %c0_i32 = arith.constant 0 : i32
    %c0_i32_0 = arith.constant 0 : i32
    return %arg0, %c0_i32 : i32, i32
  }
}

module attributes {stable_mosaic.version = 11 : i64} {
  func.func @_aggregate_kernel(%arg0: i32, %arg1: i32, %arg2: memref<200x256xbf16, #tpu.memory_space<vmem>>, %arg3: memref<256x128xbf16, #tpu.memory_space<vmem>>, %arg4: memref<1x128xf32, #tpu.memory_space<vmem>>, %arg5: memref<200x128xf32, #tpu.memory_space<vmem>>, %arg6: memref<200x128xf32, #tpu.memory_space<vmem>>) attributes {dimension_semantics = [#tpu.dimension_semantics<parallel>, #tpu.dimension_semantics<arbitrary>], iteration_bounds = array<i64: 1, 1>, scalar_prefetch = 0 : i64, scratch_operands = 1 : i64, tpu.core_type = #tpu.core_type<tc>, window_params = [{transform_indices = @transform_0, window_bounds = array<i64: 200, 256>}, {transform_indices = @transform_1, window_bounds = array<i64: 256, 128>}, {pipeline_mode = #tpu.pipeline_mode<synchronous>, transform_indices = @transform_2, window_bounds = array<i64: 1, 128>}, {transform_indices = @transform_3, window_bounds = array<i64: 200, 128>}]} {
    %c0_i32 = arith.constant 0 : i32
    %0 = arith.cmpi eq, %arg1, %c0_i32 : i32
    %1 = arith.extui %0 : i1 to i32
    %c0_i32_0 = arith.constant 0 : i32
    %2 = arith.cmpi ne, %1, %c0_i32_0 : i32
    scf.if %2 {
      %cst_10 = arith.constant 0.000000e+00 : f32
      %12 = vector.broadcast %cst_10 : f32 to vector<200x128xf32>
      %c0_11 = arith.constant 0 : index
      %c0_12 = arith.constant 0 : index
      %13 = vector.load %arg6[%c0_11, %c0_12] : memref<200x128xf32, #tpu.memory_space<vmem>>, vector<200x128xf32>
      tpu.vector_store %arg6[%c0_11, %c0_12], %12 {strides = array<i32>} : memref<200x128xf32, #tpu.memory_space<vmem>>, vector<200x128xf32>,
    } else {
    }
    %c0 = arith.constant 0 : index
    %c0_1 = arith.constant 0 : index
    %3 = vector.load %arg6[%c0, %c0_1] : memref<200x128xf32, #tpu.memory_space<vmem>>, vector<200x128xf32>
    %c0_2 = arith.constant 0 : index
    %c0_3 = arith.constant 0 : index
    %4 = vector.load %arg2[%c0_2, %c0_3] : memref<200x256xbf16, #tpu.memory_space<vmem>>, vector<200x256xbf16>
    %c0_4 = arith.constant 0 : index
    %c0_5 = arith.constant 0 : index
    %5 = vector.load %arg3[%c0_4, %c0_5] : memref<256x128xbf16, #tpu.memory_space<vmem>>, vector<256x128xbf16>
    %cst = arith.constant dense<0.000000e+00> : vector<200x128xf32>
    %6 = tpu.matmul %4, %5, %cst {dimension_numbers = #tpu.dot_dimension_numbers<[1], [0], [0], [1], [0, 0, 1, 1], [], []>} : vector<200x256xbf16>, vector<256x128xbf16>, vector<200x128xf32> -> vector<200x128xf32>
    %7 = arith.addf %3, %6 : vector<200x128xf32>
    %c0_6 = arith.constant 0 : index
    %c0_7 = arith.constant 0 : index
    %8 = vector.load %arg6[%c0_6, %c0_7] : memref<200x128xf32, #tpu.memory_space<vmem>>, vector<200x128xf32>
    tpu.vector_store %arg6[%c0_6, %c0_7], %7 {strides = array<i32>} : memref<200x128xf32, #tpu.memory_space<vmem>>, vector<200x128xf32>,
    %c0_i32_8 = arith.constant 0 : i32
    %9 = arith.cmpi eq, %arg1, %c0_i32_8 : i32
    %10 = arith.extui %9 : i1 to i32
    %c0_i32_9 = arith.constant 0 : i32
    %11 = arith.cmpi ne, %10, %c0_i32_9 : i32
    scf.if %11 {
      %c0_10 = arith.constant 0 : index
      %c0_11 = arith.constant 0 : index
      %12 = vector.load %arg6[%c0_10, %c0_11] : memref<200x128xf32, #tpu.memory_space<vmem>>, vector<200x128xf32>
      %c0_12 = arith.constant 0 : index
      %c0_13 = arith.constant 0 : index
      %13 = vector.load %arg4[%c0_12, %c0_13] : memref<1x128xf32, #tpu.memory_space<vmem>>, vector<1x128xf32>
      %14 = vector.broadcast %13 : vector<1x128xf32> to vector<200x128xf32>
      %15 = arith.addf %12, %14 : vector<200x128xf32>
      %c0_14 = arith.constant 0 : index
      %c0_15 = arith.constant 0 : index
      %16 = vector.load %arg5[%c0_14, %c0_15] : memref<200x128xf32, #tpu.memory_space<vmem>>, vector<200x128xf32>
      tpu.vector_store %arg5[%c0_14, %c0_15], %15 {strides = array<i32>} : memref<200x128xf32, #tpu.memory_space<vmem>>, vector<200x128xf32>,
    } else {
    }
    return
  }
  func.func @transform_0(%arg0: i32, %arg1: i32) -> (i32, i32) {
    %c0_i32 = arith.constant 0 : i32
    return %arg0, %arg1 : i32, i32
  }
  func.func @transform_1(%arg0: i32, %arg1: i32) -> (i32, i32) {
    %c0_i32 = arith.constant 0 : i32
    %c0_i32_0 = arith.constant 0 : i32
    return %arg1, %c0_i32 : i32, i32
  }
  func.func @transform_2(%arg0: i32, %arg1: i32) -> (i32, i32) {
    %c0_i32 = arith.constant 0 : i32
    %c0_i32_0 = arith.constant 0 : i32
    %c0_i32_1 = arith.constant 0 : i32
    return %c0_i32, %c0_i32_0 : i32, i32
  }
  func.func @transform_3(%arg0: i32, %arg1: i32) -> (i32, i32) {
    %c0_i32 = arith.constant 0 : i32
    %c0_i32_0 = arith.constant 0 : i32
    return %arg0, %c0_i32 : i32, i32
  }
}

</mosaic_0001>

<llo_original>
// kernel: graph_convolution.2
$region0: #{graph_convolution.2}
  #allocation0 [shape = 'u32[]', space=smem, size = 0x4, offset = 0x4, fixed_abs, tag = 'smem constant byte address 0x4 - core index']
  #allocation1 [shape = 'u32[72,128]{1,0:T(1,128)}', space=vmem, size = 0x9000, scoped, tag = 'internal scratch']
  %s0 = inlined_call_operand.vmem [shape: bf16[256,96], index: 0, kind: input, shape index: {}]
  %s1 = inlined_call_operand.vmem [shape: bf16[96,128], index: 1, kind: input, shape index: {}]
  %s2 = inlined_call_operand.vmem [shape: bf16[256,128], index: 2, kind: output, shape index: {}]
  %s3 = sld [smem:[#allocation0]]
  $region18: #{graph_convolution.2} parent=0
    _
  %s5 = ssub.s32 1, %s3
  %s6 = scalar_select 0, %s5, %s3
  // Predicated region
  $region2: #{graph_convolution.2} parent=0 // pred_check
    _
  $region3: #{graph_convolution.2} parent=0 // pred_check_branch
    %8 = sbr.rel (0) target = $region5
  $region4: #{graph_convolution.2} parent=0 // pred_region
    _
  $region5: #{graph_convolution.2} parent=0 // pred_fallthru
    _
  // Predicated region
  $region6: #{graph_convolution.2} parent=0 // pred_check
    _
  $region7: #{graph_convolution.2} parent=0 // pred_check_branch
    %10 = sbr.rel (0) target = $region9
  $region8: #{graph_convolution.2} parent=0 // pred_region
    _
  $region9: #{graph_convolution.2} parent=0 // pred_fallthru
    _
  %v12 = vld [vmem:[%s0] sm:$0xf]
  %v13 = vld [vmem:[%s0 + $0x4] sm:$0xf]
  %v14 = vld [vmem:[%s0 + $0x8] sm:$0xf]
  %v15 = vld [vmem:[%s0 + $0xc] sm:$0xf]
  %v16 = vld [vmem:[%s0 + $0x10] sm:$0xf]
  %v17 = vld [vmem:[%s0 + $0x14] sm:$0xf]
  %v18 = vld [vmem:[%s0 + $0x18] sm:$0xf]
  %v19 = vld [vmem:[%s0 + $0x1c] sm:$0xf]
  %v20 = vld [vmem:[%s0 + $0x20] sm:$0xf]
  %v21 = vld [vmem:[%s0 + $0x24] sm:$0xf]
  %v22 = vld [vmem:[%s0 + $0x28] sm:$0xf]
  %v23 = vld [vmem:[%s0 + $0x2c] sm:$0xf]
  %v24 = vld [vmem:[%s0 + $0x30] sm:$0xf]
  %v25 = vld [vmem:[%s0 + $0x34] sm:$0xf]
  %v26 = vld [vmem:[%s0 + $0x38] sm:$0xf]
  %v27 = vld [vmem:[%s0 + $0x3c] sm:$0xf]
  %v28 = vld [vmem:[%s0 + $0x40] sm:$0xf]
  %v29 = vld [vmem:[%s0 + $0x44] sm:$0xf]
  %v30 = vld [vmem:[%s0 + $0x48] sm:$0xf]
  %v31 = vld [vmem:[%s0 + $0x4c] sm:$0xf]
  %v32 = vld [vmem:[%s0 + $0x50] sm:$0xf]
  %v33 = vld [vmem:[%s0 + $0x54] sm:$0xf]
  %v34 = vld [vmem:[%s0 + $0x58] sm:$0xf]
  %v35 = vld [vmem:[%s0 + $0x5c] sm:$0xf]
  %v36 = vld [vmem:[%s0 + $0x60] sm:$0xf]
  %v37 = vld [vmem:[%s0 + $0x64] sm:$0xf]
  %v38 = vld [vmem:[%s0 + $0x68] sm:$0xf]
  %v39 = vld [vmem:[%s0 + $0x6c] sm:$0xf]
  %v40 = vld [vmem:[%s0 + $0x70] sm:$0xf]
  %v41 = vld [vmem:[%s0 + $0x74] sm:$0xf]
  %v42 = vld [vmem:[%s0 + $0x78] sm:$0xf]
  %v43 = vld [vmem:[%s0 + $0x7c] sm:$0xf]
  %v44 = vld [vmem:[%s1] sm:$0xf]
  %v45 = vld [vmem:[%s1 + $0x4] sm:$0xf]
  %v46 = vld [vmem:[%s1 + $0x8] sm:$0xf]
  %v47 = vld [vmem:[%s1 + $0xc] sm:$0xf]
  %v48 = vld [vmem:[%s1 + $0x10] sm:$0xf]
  %v49 = vld [vmem:[%s1 + $0x14] sm:$0xf]
  %v50 = vld [vmem:[%s1 + $0x18] sm:$0xf]
  %v51 = vld [vmem:[%s1 + $0x1c] sm:$0xf]
  %v52 = vld [vmem:[%s1 + $0x20] sm:$0xf]
  %v53 = vld [vmem:[%s1 + $0x24] sm:$0xf]
  %v54 = vld [vmem:[%s1 + $0x28] sm:$0xf]
  %v55 = vld [vmem:[%s1 + $0x2c] sm:$0xf]
  %v88 = vunpack.c.l.b16 %v12
  %v89 = vunpack.c.l.b16 %v13
  %v90 = vunpack.c.l.b16 %v14
  %v91 = vunpack.c.l.b16 %v15
  %v92 = vunpack.c.l.b16 %v16
  %v93 = vunpack.c.l.b16 %v17
  %v94 = vunpack.c.l.b16 %v18
  %v95 = vunpack.c.l.b16 %v19
  %v96 = vunpack.c.l.b16 %v20
  %v97 = vunpack.c.l.b16 %v21
  %v98 = vunpack.c.l.b16 %v22
  %v99 = vunpack.c.l.b16 %v23
  %v100 = vunpack.c.l.b16 %v24
  %v101 = vunpack.c.l.b16 %v25
  %v102 = vunpack.c.l.b16 %v26
  %v103 = vunpack.c.l.b16 %v27
  %v104 = vunpack.c.l.b16 %v28
  %v105 = vunpack.c.l.b16 %v29
  %v106 = vunpack.c.l.b16 %v30
  %v107 = vunpack.c.l.b16 %v31
  %v108 = vunpack.c.l.b16 %v32
  %v109 = vunpack.c.l.b16 %v33
  %v110 = vunpack.c.l.b16 %v34
  %v111 = vunpack.c.l.b16 %v35
  %v112 = vunpack.c.l.b16 %v36
  %v113 = vunpack.c.l.b16 %v37
  %v114 = vunpack.c.l.b16 %v38
  %v115 = vunpack.c.l.b16 %v39
  %v116 = vunpack.c.l.b16 %v40
  %v117 = vunpack.c.l.b16 %v41
  %v118 = vunpack.c.l.b16 %v42
  %v119 = vunpack.c.l.b16 %v43
  %v120 = vpack.c.b16 %v89, %v88
  %v121 = vpack.c.b16 %v91, %v90
  %v122 = vpack.c.b16 %v93, %v92
  %v123 = vpack.c.b16 %v95, %v94
  %v124 = vpack.c.b16 %v97, %v96
  %v125 = vpack.c.b16 %v99, %v98
  %v126 = vpack.c.b16 %v101, %v100
  %v127 = vpack.c.b16 %v103, %v102
  %v128 = vpack.c.b16 %v105, %v104
  %v129 = vpack.c.b16 %v107, %v106
  %v130 = vpack.c.b16 %v109, %v108
  %v131 = vpack.c.b16 %v111, %v110
  %v132 = vpack.c.b16 %v113, %v112
  %v133 = vpack.c.b16 %v115, %v114
  %v134 = vpack.c.b16 %v117, %v116
  %v135 = vpack.c.b16 %v119, %v118
  %v148 = vunpack.c.l.b16 %v44
  %v149 = vunpack.c.l.b16 %v45
  %v150 = vunpack.c.l.b16 %v46
  %v151 = vunpack.c.l.b16 %v47
  %v152 = vunpack.c.l.b16 %v48
  %v153 = vunpack.c.l.b16 %v49
  %v154 = vunpack.c.l.b16 %v50
  %v155 = vunpack.c.l.b16 %v51
  %v156 = vunpack.c.l.b16 %v52
  %v157 = vunpack.c.l.b16 %v53
  %v158 = vunpack.c.l.b16 %v54
  %v159 = vunpack.c.l.b16 %v55
  %v160 = vpack.c.b16 %v149, %v148
  %v161 = vpack.c.b16 %v151, %v150
  %v162 = vpack.c.b16 %v153, %v152
  %v163 = vpack.c.b16 %v155, %v154
  %v164 = vpack.c.b16 %v157, %v156
  %v165 = vpack.c.b16 %v159, %v158
  %vm172 = vcmask 785408
  %v174 = vsel %vm172, %v120, 0
  %v177 = vsel %vm172, %v121, 0
  %v180 = vsel %vm172, %v122, 0
  %v183 = vsel %vm172, %v123, 0
  %v186 = vsel %vm172, %v124, 0
  %v189 = vsel %vm172, %v125, 0
  %v192 = vsel %vm172, %v126, 0
  %v195 = vsel %vm172, %v127, 0
  %v198 = vsel %vm172, %v128, 0
  %v201 = vsel %vm172, %v129, 0
  %v204 = vsel %vm172, %v130, 0
  %v207 = vsel %vm172, %v131, 0
  %v210 = vsel %vm172, %v132, 0
  %v213 = vsel %vm172, %v133, 0
  %v216 = vsel %vm172, %v134, 0
  %v219 = vsel %vm172, %v135, 0
  %221 = vmatpush.bf16.msra.mxu0 0
  %222 = vmatpush.bf16.msra.mxu0 0
  %223 = vmatpush.bf16.msra.mxu0 %v165
  %224 = vmatpush.bf16.msra.mxu0 %v164
  %225 = vmatpush.bf16.msra.mxu0 %v163
  %226 = vmatpush.bf16.msra.mxu0 %v162
  %227 = vmatpush.bf16.msra.mxu0 %v161
  %228 = vmatpush.bf16.msra.mxu0 %v160
  %229 = vmatmul.bf16.gmra.mxu0 %v174
  %v230 = vpop.f32.mrf.mxu0
  %v231 = vadd.f32 0.0, %v230
  %v232 = vpop.f32.mrf.mxu0
  %v233 = vadd.f32 0.0, %v232
  %234 = vmatmul.bf16.gmra.mxu0 %v177
  %v235 = vpop.f32.mrf.mxu0
  %v236 = vadd.f32 0.0, %v235
  %v237 = vpop.f32.mrf.mxu0
  %v238 = vadd.f32 0.0, %v237
  %239 = vmatmul.bf16.gmra.mxu0 %v180
  %v240 = vpop.f32.mrf.mxu0
  %v241 = vadd.f32 0.0, %v240
  %v242 = vpop.f32.mrf.mxu0
  %v243 = vadd.f32 0.0, %v242
  %244 = vmatmul.bf16.gmra.mxu0 %v183
  %v245 = vpop.f32.mrf.mxu0
  %v246 = vadd.f32 0.0, %v245
  %v247 = vpop.f32.mrf.mxu0
  %v248 = vadd.f32 0.0, %v247
  %249 = vmatmul.bf16.gmra.mxu0 %v186
  %v250 = vpop.f32.mrf.mxu0
  %v251 = vadd.f32 0.0, %v250
  %v252 = vpop.f32.mrf.mxu0
  %v253 = vadd.f32 0.0, %v252
  %254 = vmatmul.bf16.gmra.mxu0 %v189
  %v255 = vpop.f32.mrf.mxu0
  %v256 = vadd.f32 0.0, %v255
  %v257 = vpop.f32.mrf.mxu0
  %v258 = vadd.f32 0.0, %v257
  %259 = vmatmul.bf16.gmra.mxu0 %v192
  %v260 = vpop.f32.mrf.mxu0
  %v261 = vadd.f32 0.0, %v260
  %v262 = vpop.f32.mrf.mxu0
  %v263 = vadd.f32 0.0, %v262
  %264 = vmatmul.bf16.gmra.mxu0 %v195
  %v265 = vpop.f32.mrf.mxu0
  %v266 = vadd.f32 0.0, %v265
  %v267 = vpop.f32.mrf.mxu0
  %v268 = vadd.f32 0.0, %v267
  %269 = vmatmul.bf16.gmra.mxu0 %v198
  %v270 = vpop.f32.mrf.mxu0
  %v271 = vadd.f32 0.0, %v270
  %v272 = vpop.f32.mrf.mxu0
  %v273 = vadd.f32 0.0, %v272
  %274 = vmatmul.bf16.gmra.mxu0 %v201
  %v275 = vpop.f32.mrf.mxu0
  %v276 = vadd.f32 0.0, %v275
  %v277 = vpop.f32.mrf.mxu0
  %v278 = vadd.f32 0.0, %v277
  %279 = vmatmul.bf16.gmra.mxu0 %v204
  %v280 = vpop.f32.mrf.mxu0
  %v281 = vadd.f32 0.0, %v280
  %v282 = vpop.f32.mrf.mxu0
  %v283 = vadd.f32 0.0, %v282
  %284 = vmatmul.bf16.gmra.mxu0 %v207
  %v285 = vpop.f32.mrf.mxu0
  %v286 = vadd.f32 0.0, %v285
  %v287 = vpop.f32.mrf.mxu0
  %v288 = vadd.f32 0.0, %v287
  %289 = vmatmul.bf16.gmra.mxu0 %v210
  %v290 = vpop.f32.mrf.mxu0
  %v291 = vadd.f32 0.0, %v290
  %v292 = vpop.f32.mrf.mxu0
  %v293 = vadd.f32 0.0, %v292
  %294 = vmatmul.bf16.gmra.mxu0 %v213
  %v295 = vpop.f32.mrf.mxu0
  %v296 = vadd.f32 0.0, %v295
  %v297 = vpop.f32.mrf.mxu0
  %v298 = vadd.f32 0.0, %v297
  %299 = vmatmul.bf16.gmra.mxu0 %v216
  %v300 = vpop.f32.mrf.mxu0
  %v301 = vadd.f32 0.0, %v300
  %v302 = vpop.f32.mrf.mxu0
  %v303 = vadd.f32 0.0, %v302
  %304 = vmatmul.bf16.gmra.mxu0 %v219
  %v305 = vpop.f32.mrf.mxu0
  %v306 = vadd.f32 0.0, %v305
  %v307 = vpop.f32.mrf.mxu0
  %v308 = vadd.f32 0.0, %v307
  %309 = vdwg.mxu0
  %v310 = vpack.c.bf16 %v231, %v231
  %v311 = vpack.c.bf16 %v233, %v233
  %v312 = vpack.c.bf16 %v236, %v236
  %v313 = vpack.c.bf16 %v238, %v238
  %v314 = vpack.c.bf16 %v241, %v241
  %v315 = vpack.c.bf16 %v243, %v243
  %v316 = vpack.c.bf16 %v246, %v246
  %v317 = vpack.c.bf16 %v248, %v248
  %v318 = vpack.c.bf16 %v251, %v251
  %v319 = vpack.c.bf16 %v253, %v253
  %v320 = vpack.c.bf16 %v256, %v256
  %v321 = vpack.c.bf16 %v258, %v258
  %v322 = vpack.c.bf16 %v261, %v261
  %v323 = vpack.c.bf16 %v263, %v263
  %v324 = vpack.c.bf16 %v266, %v266
  %v325 = vpack.c.bf16 %v268, %v268
  %v326 = vpack.c.bf16 %v271, %v271
  %v327 = vpack.c.bf16 %v273, %v273
  %v328 = vpack.c.bf16 %v276, %v276
  %v329 = vpack.c.bf16 %v278, %v278
  %v330 = vpack.c.bf16 %v281, %v281
  %v331 = vpack.c.bf16 %v283, %v283
  %v332 = vpack.c.bf16 %v286, %v286
  %v333 = vpack.c.bf16 %v288, %v288
  %v334 = vpack.c.bf16 %v291, %v291
  %v335 = vpack.c.bf16 %v293, %v293
  %v336 = vpack.c.bf16 %v296, %v296
  %v337 = vpack.c.bf16 %v298, %v298
  %v338 = vpack.c.bf16 %v301, %v301
  %v339 = vpack.c.bf16 %v303, %v303
  %v340 = vpack.c.bf16 %v306, %v306
  %v341 = vpack.c.bf16 %v308, %v308
  %342 = vst [vmem:[%s2] sm:$0xf] %v310
  %343 = vst [vmem:[%s2 + $0x4] sm:$0xf] %v311
  %344 = vst [vmem:[%s2 + $0x8] sm:$0xf] %v312
  %345 = vst [vmem:[%s2 + $0xc] sm:$0xf] %v313
  %346 = vst [vmem:[%s2 + $0x10] sm:$0xf] %v314
  %347 = vst [vmem:[%s2 + $0x14] sm:$0xf] %v315
  %348 = vst [vmem:[%s2 + $0x18] sm:$0xf] %v316
  %349 = vst [vmem:[%s2 + $0x1c] sm:$0xf] %v317
  %350 = vst [vmem:[%s2 + $0x20] sm:$0xf] %v318
  %351 = vst [vmem:[%s2 + $0x24] sm:$0xf] %v319
  %352 = vst [vmem:[%s2 + $0x28] sm:$0xf] %v320
  %353 = vst [vmem:[%s2 + $0x2c] sm:$0xf] %v321
  %354 = vst [vmem:[%s2 + $0x30] sm:$0xf] %v322
  %355 = vst [vmem:[%s2 + $0x34] sm:$0xf] %v323
  %356 = vst [vmem:[%s2 + $0x38] sm:$0xf] %v324
  %357 = vst [vmem:[%s2 + $0x3c] sm:$0xf] %v325
  %358 = vst [vmem:[%s2 + $0x40] sm:$0xf] %v326
  %359 = vst [vmem:[%s2 + $0x44] sm:$0xf] %v327
  %360 = vst [vmem:[%s2 + $0x48] sm:$0xf] %v328
  %361 = vst [vmem:[%s2 + $0x4c] sm:$0xf] %v329
  %362 = vst [vmem:[%s2 + $0x50] sm:$0xf] %v330
  %363 = vst [vmem:[%s2 + $0x54] sm:$0xf] %v331
  %364 = vst [vmem:[%s2 + $0x58] sm:$0xf] %v332
  %365 = vst [vmem:[%s2 + $0x5c] sm:$0xf] %v333
  %366 = vst [vmem:[%s2 + $0x60] sm:$0xf] %v334
  %367 = vst [vmem:[%s2 + $0x64] sm:$0xf] %v335
  %368 = vst [vmem:[%s2 + $0x68] sm:$0xf] %v336
  %369 = vst [vmem:[%s2 + $0x6c] sm:$0xf] %v337
  %370 = vst [vmem:[%s2 + $0x70] sm:$0xf] %v338
  %371 = vst [vmem:[%s2 + $0x74] sm:$0xf] %v339
  %372 = vst [vmem:[%s2 + $0x78] sm:$0xf] %v340
  %373 = vst [vmem:[%s2 + $0x7c] sm:$0xf] %v341
  // Predicated region
  $region10: #{graph_convolution.2} parent=0 // pred_check
    _
  $region11: #{graph_convolution.2} parent=0 // pred_check_branch
    %375 = sbr.rel (0) target = $region13
  $region12: #{graph_convolution.2} parent=0 // pred_region
    _
  $region13: #{graph_convolution.2} parent=0 // pred_fallthru
    _
  // Predicated region
  $region14: #{graph_convolution.2} parent=0 // pred_check
    _
  $region15: #{graph_convolution.2} parent=0 // pred_check_branch
    %377 = sbr.rel (0) target = $region17
  $region16: #{graph_convolution.2} parent=0 // pred_region
    _
  $region17: #{graph_convolution.2} parent=0 // pred_fallthru
    _

// kernel: graph_convolution.3
$region0: #{graph_convolution.3}
  #allocation0 [shape = 'u32[]', space=smem, size = 0x4, offset = 0x4, fixed_abs, tag = 'smem constant byte address 0x4 - core index']
  #allocation1 [shape = 'u32[72,128]{1,0:T(1,128)}', space=vmem, size = 0x9000, scoped, tag = 'internal scratch']
  #allocation2 [shape = 'f32[200,128]{1,0:T(8,128)}', space=vmem, size = 0x19000, scoped, tag = 'scratch operand']
  %s0 = inlined_call_operand.vmem [shape: bf16[200,256], index: 0, kind: input, shape index: {}]
  %s1 = inlined_call_operand.vmem [shape: bf16[256,128], index: 1, kind: input, shape index: {}]
  %s2 = inlined_call_operand.vmem [shape: f32[1,128], index: 2, kind: input, shape index: {}]
  %s3 = inlined_call_operand.vmem [shape: f32[200,128], index: 3, kind: output, shape index: {}]
  %s4 = sld [smem:[#allocation0]]
  $region30: #{graph_convolution.3} parent=0
    _
  %s6 = ssub.s32 1, %s4
  %s7 = scalar_select 0, %s6, %s4
  // Predicated region
  $region2: #{graph_convolution.3} parent=0 // pred_check
    _
  $region3: #{graph_convolution.3} parent=0 // pred_check_branch
    %9 = sbr.rel (0) target = $region5
  $region4: #{graph_convolution.3} parent=0 // pred_region
    _
  $region5: #{graph_convolution.3} parent=0 // pred_fallthru
    _
  // Predicated region
  $region6: #{graph_convolution.3} parent=0 // pred_check
    _
  $region7: #{graph_convolution.3} parent=0 // pred_check_branch
    %11 = sbr.rel (0) target = $region9
  $region8: #{graph_convolution.3} parent=0 // pred_region
    _
  $region9: #{graph_convolution.3} parent=0 // pred_fallthru
    _
  // Predicated region
  $region10: #{graph_convolution.3} parent=0 // pred_check
    _
  $region11: #{graph_convolution.3} parent=0 // pred_check_branch
    %13 = sbr.rel (0) target = $region13
  $region12: #{graph_convolution.3} parent=0 // pred_region
    _
  $region13: #{graph_convolution.3} parent=0 // pred_fallthru
    _
  %p14 = scmp.eq.s32.totalorder 0, 0
  // Predicated region
  $region14: #{graph_convolution.3} parent=0 // pred_check
    %p15 = pneg %p14
  $region15: #{graph_convolution.3} parent=0 // pred_check_branch
    %17 = sbr.rel (%p15) target = $region17
  $region16: #{graph_convolution.3} parent=0 // pred_region
    %18 = vst [vmem:[#allocation2] sm:$0xff] 0.0
    %19 = vst [vmem:[#allocation2 + $0x8] sm:$0xff] 0.0
    %20 = vst [vmem:[#allocation2 + $0x10] sm:$0xff] 0.0
    %21 = vst [vmem:[#allocation2 + $0x18] sm:$0xff] 0.0
    %22 = vst [vmem:[#allocation2 + $0x20] sm:$0xff] 0.0
    %23 = vst [vmem:[#allocation2 + $0x28] sm:$0xff] 0.0
    %24 = vst [vmem:[#allocation2 + $0x30] sm:$0xff] 0.0
    %25 = vst [vmem:[#allocation2 + $0x38] sm:$0xff] 0.0
    %26 = vst [vmem:[#allocation2 + $0x40] sm:$0xff] 0.0
    %27 = vst [vmem:[#allocation2 + $0x48] sm:$0xff] 0.0
    %28 = vst [vmem:[#allocation2 + $0x50] sm:$0xff] 0.0
    %29 = vst [vmem:[#allocation2 + $0x58] sm:$0xff] 0.0
    %30 = vst [vmem:[#allocation2 + $0x60] sm:$0xff] 0.0
    %31 = vst [vmem:[#allocation2 + $0x68] sm:$0xff] 0.0
    %32 = vst [vmem:[#allocation2 + $0x70] sm:$0xff] 0.0
    %33 = vst [vmem:[#allocation2 + $0x78] sm:$0xff] 0.0
    %34 = vst [vmem:[#allocation2 + $0x80] sm:$0xff] 0.0
    %35 = vst [vmem:[#allocation2 + $0x88] sm:$0xff] 0.0
    %36 = vst [vmem:[#allocation2 + $0x90] sm:$0xff] 0.0
    %37 = vst [vmem:[#allocation2 + $0x98] sm:$0xff] 0.0
    %38 = vst [vmem:[#allocation2 + $0xa0] sm:$0xff] 0.0
    %39 = vst [vmem:[#allocation2 + $0xa8] sm:$0xff] 0.0
    %40 = vst [vmem:[#allocation2 + $0xb0] sm:$0xff] 0.0
    %41 = vst [vmem:[#allocation2 + $0xb8] sm:$0xff] 0.0
    %42 = vst [vmem:[#allocation2 + $0xc0] sm:$0xff] 0.0
  $region17: #{graph_convolution.3} parent=0 // pred_fallthru
    _
  %v43 = vld [vmem:[#allocation2] sm:$0xff]
  %v44 = vld [vmem:[#allocation2 + $0x8] sm:$0xff]
  %v45 = vld [vmem:[#allocation2 + $0x10] sm:$0xff]
  %v46 = vld [vmem:[#allocation2 + $0x18] sm:$0xff]
  %v47 = vld [vmem:[#allocation2 + $0x20] sm:$0xff]
  %v48 = vld [vmem:[#allocation2 + $0x28] sm:$0xff]
  %v49 = vld [vmem:[#allocation2 + $0x30] sm:$0xff]
  %v50 = vld [vmem:[#allocation2 + $0x38] sm:$0xff]
  %v51 = vld [vmem:[#allocation2 + $0x40] sm:$0xff]
  %v52 = vld [vmem:[#allocation2 + $0x48] sm:$0xff]
  %v53 = vld [vmem:[#allocation2 + $0x50] sm:$0xff]
  %v54 = vld [vmem:[#allocation2 + $0x58] sm:$0xff]
  %v55 = vld [vmem:[#allocation2 + $0x60] sm:$0xff]
  %v56 = vld [vmem:[#allocation2 + $0x68] sm:$0xff]
  %v57 = vld [vmem:[#allocation2 + $0x70] sm:$0xff]
  %v58 = vld [vmem:[#allocation2 + $0x78] sm:$0xff]
  %v59 = vld [vmem:[#allocation2 + $0x80] sm:$0xff]
  %v60 = vld [vmem:[#allocation2 + $0x88] sm:$0xff]
  %v61 = vld [vmem:[#allocation2 + $0x90] sm:$0xff]
  %v62 = vld [vmem:[#allocation2 + $0x98] sm:$0xff]
  %v63 = vld [vmem:[#allocation2 + $0xa0] sm:$0xff]
  %v64 = vld [vmem:[#allocation2 + $0xa8] sm:$0xff]
  %v65 = vld [vmem:[#allocation2 + $0xb0] sm:$0xff]
  %v66 = vld [vmem:[#allocation2 + $0xb8] sm:$0xff]
  %v67 = vld [vmem:[#allocation2 + $0xc0] sm:$0xff]
  %v68 = vld [vmem:[%s0] sm:$0xff]
  %v69 = vld [vmem:[%s0 + $0x8] sm:$0xff]
  %v70 = vld [vmem:[%s0 + $0x10] sm:$0xff]
  %v71 = vld [vmem:[%s0 + $0x18] sm:$0xff]
  %v72 = vld [vmem:[%s0 + $0x20] sm:$0xff]
  %v73 = vld [vmem:[%s0 + $0x28] sm:$0xff]
  %v74 = vld [vmem:[%s0 + $0x30] sm:$0xff]
  %v75 = vld [vmem:[%s0 + $0x38] sm:$0xff]
  %v76 = vld [vmem:[%s0 + $0x40] sm:$0xff]
  %v77 = vld [vmem:[%s0 + $0x48] sm:$0xff]
  %v78 = vld [vmem:[%s0 + $0x50] sm:$0xff]
  %v79 = vld [vmem:[%s0 + $0x58] sm:$0xff]
  %v80 = vld [vmem:[%s0 + $0x60] sm:$0xff]
  %v81 = vld [vmem:[%s0 + $0x68] sm:$0xff]
  %v82 = vld [vmem:[%s0 + $0x70] sm:$0xff]
  %v83 = vld [vmem:[%s0 + $0x78] sm:$0xff]
  %v84 = vld [vmem:[%s0 + $0x80] sm:$0xff]
  %v85 = vld [vmem:[%s0 + $0x88] sm:$0xff]
  %v86 = vld [vmem:[%s0 + $0x90] sm:$0xff]
  %v87 = vld [vmem:[%s0 + $0x98] sm:$0xff]
  %v88 = vld [vmem:[%s0 + $0xa0] sm:$0xff]
  %v89 = vld [vmem:[%s0 + $0xa8] sm:$0xff]
  %v90 = vld [vmem:[%s0 + $0xb0] sm:$0xff]
  %v91 = vld [vmem:[%s0 + $0xb8] sm:$0xff]
  %v92 = vld [vmem:[%s0 + $0xc0] sm:$0xff]
  %v93 = vld [vmem:[%s1] sm:$0xf]
  %v94 = vld [vmem:[%s1 + $0x4] sm:$0xf]
  %v95 = vld [vmem:[%s1 + $0x8] sm:$0xf]
  %v96 = vld [vmem:[%s1 + $0xc] sm:$0xf]
  %v97 = vld [vmem:[%s1 + $0x10] sm:$0xf]
  %v98 = vld [vmem:[%s1 + $0x14] sm:$0xf]
  %v99 = vld [vmem:[%s1 + $0x18] sm:$0xf]
  %v100 = vld [vmem:[%s1 + $0x1c] sm:$0xf]
  %v101 = vld [vmem:[%s1 + $0x20] sm:$0xf]
  %v102 = vld [vmem:[%s1 + $0x24] sm:$0xf]
  %v103 = vld [vmem:[%s1 + $0x28] sm:$0xf]
  %v104 = vld [vmem:[%s1 + $0x2c] sm:$0xf]
  %v105 = vld [vmem:[%s1 + $0x30] sm:$0xf]
  %v106 = vld [vmem:[%s1 + $0x34] sm:$0xf]
  %v107 = vld [vmem:[%s1 + $0x38] sm:$0xf]
  %v108 = vld [vmem:[%s1 + $0x3c] sm:$0xf]
  %v109 = vld [vmem:[%s1 + $0x40] sm:$0xf]
  %v110 = vld [vmem:[%s1 + $0x44] sm:$0xf]
  %v111 = vld [vmem:[%s1 + $0x48] sm:$0xf]
  %v112 = vld [vmem:[%s1 + $0x4c] sm:$0xf]
  %v113 = vld [vmem:[%s1 + $0x50] sm:$0xf]
  %v114 = vld [vmem:[%s1 + $0x54] sm:$0xf]
  %v115 = vld [vmem:[%s1 + $0x58] sm:$0xf]
  %v116 = vld [vmem:[%s1 + $0x5c] sm:$0xf]
  %v117 = vld [vmem:[%s1 + $0x60] sm:$0xf]
  %v118 = vld [vmem:[%s1 + $0x64] sm:$0xf]
  %v119 = vld [vmem:[%s1 + $0x68] sm:$0xf]
  %v120 = vld [vmem:[%s1 + $0x6c] sm:$0xf]
  %v121 = vld [vmem:[%s1 + $0x70] sm:$0xf]
  %v122 = vld [vmem:[%s1 + $0x74] sm:$0xf]
  %v123 = vld [vmem:[%s1 + $0x78] sm:$0xf]
  %v124 = vld [vmem:[%s1 + $0x7c] sm:$0xf]
  %v150 = vunpack.c.l.b16 %v68
  %v151 = vunpack.c.h.b16 %v68
  %v152 = vunpack.c.l.b16 %v69
  %v153 = vunpack.c.h.b16 %v69
  %v154 = vunpack.c.l.b16 %v70
  %v155 = vunpack.c.h.b16 %v70
  %v156 = vunpack.c.l.b16 %v71
  %v157 = vunpack.c.h.b16 %v71
  %v158 = vunpack.c.l.b16 %v72
  %v159 = vunpack.c.h.b16 %v72
  %v160 = vunpack.c.l.b16 %v73
  %v161 = vunpack.c.h.b16 %v73
  %v162 = vunpack.c.l.b16 %v74
  %v163 = vunpack.c.h.b16 %v74
  %v164 = vunpack.c.l.b16 %v75
  %v165 = vunpack.c.h.b16 %v75
  %v166 = vunpack.c.l.b16 %v76
  %v167 = vunpack.c.h.b16 %v76
  %v168 = vunpack.c.l.b16 %v77
  %v169 = vunpack.c.h.b16 %v77
  %v170 = vunpack.c.l.b16 %v78
  %v171 = vunpack.c.h.b16 %v78
  %v172 = vunpack.c.l.b16 %v79
  %v173 = vunpack.c.h.b16 %v79
  %v174 = vunpack.c.l.b16 %v80
  %v175 = vunpack.c.h.b16 %v80
  %v176 = vunpack.c.l.b16 %v81
  %v177 = vunpack.c.h.b16 %v81
  %v178 = vunpack.c.l.b16 %v82
  %v179 = vunpack.c.h.b16 %v82
  %v180 = vunpack.c.l.b16 %v83
  %v181 = vunpack.c.h.b16 %v83
  %v182 = vunpack.c.l.b16 %v84
  %v183 = vunpack.c.h.b16 %v84
  %v184 = vunpack.c.l.b16 %v85
  %v185 = vunpack.c.h.b16 %v85
  %v186 = vunpack.c.l.b16 %v86
  %v187 = vunpack.c.h.b16 %v86
  %v188 = vunpack.c.l.b16 %v87
  %v189 = vunpack.c.h.b16 %v87
  %v190 = vunpack.c.l.b16 %v88
  %v191 = vunpack.c.h.b16 %v88
  %v192 = vunpack.c.l.b16 %v89
  %v193 = vunpack.c.h.b16 %v89
  %v194 = vunpack.c.l.b16 %v90
  %v195 = vunpack.c.h.b16 %v90
  %v196 = vunpack.c.l.b16 %v91
  %v197 = vunpack.c.h.b16 %v91
  %v198 = vunpack.c.l.b16 %v92
  %v199 = vunpack.c.h.b16 %v92
  %v200 = vpack.c.b16 %v152, %v150
  %v201 = vpack.c.b16 %v153, %v151
  %v202 = vpack.c.b16 %v156, %v154
  %v203 = vpack.c.b16 %v157, %v155
  %v204 = vpack.c.b16 %v160, %v158
  %v205 = vpack.c.b16 %v161, %v159
  %v206 = vpack.c.b16 %v164, %v162
  %v207 = vpack.c.b16 %v165, %v163
  %v208 = vpack.c.b16 %v168, %v166
  %v209 = vpack.c.b16 %v169, %v167
  %v210 = vpack.c.b16 %v172, %v170
  %v211 = vpack.c.b16 %v173, %v171
  %v212 = vpack.c.b16 %v176, %v174
  %v213 = vpack.c.b16 %v177, %v175
  %v214 = vpack.c.b16 %v180, %v178
  %v215 = vpack.c.b16 %v181, %v179
  %v216 = vpack.c.b16 %v184, %v182
  %v217 = vpack.c.b16 %v185, %v183
  %v218 = vpack.c.b16 %v188, %v186
  %v219 = vpack.c.b16 %v189, %v187
  %v220 = vpack.c.b16 %v192, %v190
  %v221 = vpack.c.b16 %v193, %v191
  %v222 = vpack.c.b16 %v196, %v194
  %v223 = vpack.c.b16 %v197, %v195
  %v224 = vpack.c.b16 %v198, %v198
  %v225 = vpack.c.b16 %v199, %v199
  %v284 = vunpack.c.l.b16 %v93
  %v285 = vunpack.c.l.b16 %v94
  %v286 = vunpack.c.l.b16 %v95
  %v287 = vunpack.c.l.b16 %v96
  %v288 = vunpack.c.l.b16 %v97
  %v289 = vunpack.c.l.b16 %v98
  %v290 = vunpack.c.l.b16 %v99
  %v291 = vunpack.c.l.b16 %v100
  %v292 = vunpack.c.l.b16 %v101
  %v293 = vunpack.c.l.b16 %v102
  %v294 = vunpack.c.l.b16 %v103
  %v295 = vunpack.c.l.b16 %v104
  %v296 = vunpack.c.l.b16 %v105
  %v297 = vunpack.c.l.b16 %v106
  %v298 = vunpack.c.l.b16 %v107
  %v299 = vunpack.c.l.b16 %v108
  %v300 = vunpack.c.l.b16 %v109
  %v301 = vunpack.c.l.b16 %v110
  %v302 = vunpack.c.l.b16 %v111
  %v303 = vunpack.c.l.b16 %v112
  %v304 = vunpack.c.l.b16 %v113
  %v305 = vunpack.c.l.b16 %v114
  %v306 = vunpack.c.l.b16 %v115
  %v307 = vunpack.c.l.b16 %v116
  %v308 = vunpack.c.l.b16 %v117
  %v309 = vunpack.c.l.b16 %v118
  %v310 = vunpack.c.l.b16 %v119
  %v311 = vunpack.c.l.b16 %v120
  %v312 = vunpack.c.l.b16 %v121
  %v313 = vunpack.c.l.b16 %v122
  %v314 = vunpack.c.l.b16 %v123
  %v315 = vunpack.c.l.b16 %v124
  %v316 = vpack.c.b16 %v285, %v284
  %v317 = vpack.c.b16 %v287, %v286
  %v318 = vpack.c.b16 %v289, %v288
  %v319 = vpack.c.b16 %v291, %v290
  %v320 = vpack.c.b16 %v293, %v292
  %v321 = vpack.c.b16 %v295, %v294
  %v322 = vpack.c.b16 %v297, %v296
  %v323 = vpack.c.b16 %v299, %v298
  %v324 = vpack.c.b16 %v301, %v300
  %v325 = vpack.c.b16 %v303, %v302
  %v326 = vpack.c.b16 %v305, %v304
  %v327 = vpack.c.b16 %v307, %v306
  %v328 = vpack.c.b16 %v309, %v308
  %v329 = vpack.c.b16 %v311, %v310
  %v330 = vpack.c.b16 %v313, %v312
  %v331 = vpack.c.b16 %v315, %v314
  %348 = vmatpush.bf16.msra.mxu0 %v323
  %349 = vmatpush.bf16.msra.mxu0 %v322
  %350 = vmatpush.bf16.msra.mxu0 %v321
  %351 = vmatpush.bf16.msra.mxu0 %v320
  %352 = vmatpush.bf16.msra.mxu0 %v319
  %353 = vmatpush.bf16.msra.mxu0 %v318
  %354 = vmatpush.bf16.msra.mxu0 %v317
  %355 = vmatpush.bf16.msra.mxu0 %v316
  %356 = vmatmul.bf16.gmra.mxu0 %v200
  %v357 = vpop.f32.mrf.mxu0
  %v358 = vadd.f32 0.0, %v357
  %v359 = vpop.f32.mrf.mxu0
  %v360 = vadd.f32 0.0, %v359
  %361 = vmatmul.bf16.gmra.mxu0 %v202
  %v362 = vpop.f32.mrf.mxu0
  %v363 = vadd.f32 0.0, %v362
  %v364 = vpop.f32.mrf.mxu0
  %v365 = vadd.f32 0.0, %v364
  %366 = vmatmul.bf16.gmra.mxu0 %v204
  %v367 = vpop.f32.mrf.mxu0
  %v368 = vadd.f32 0.0, %v367
  %v369 = vpop.f32.mrf.mxu0
  %v370 = vadd.f32 0.0, %v369
  %371 = vmatmul.bf16.gmra.mxu0 %v206
  %v372 = vpop.f32.mrf.mxu0
  %v373 = vadd.f32 0.0, %v372
  %v374 = vpop.f32.mrf.mxu0
  %v375 = vadd.f32 0.0, %v374
  %376 = vmatmul.bf16.gmra.mxu0 %v208
  %v377 = vpop.f32.mrf.mxu0
  %v378 = vadd.f32 0.0, %v377
  %v379 = vpop.f32.mrf.mxu0
  %v380 = vadd.f32 0.0, %v379
  %381 = vmatmul.bf16.gmra.mxu0 %v210
  %v382 = vpop.f32.mrf.mxu0
  %v383 = vadd.f32 0.0, %v382
  %v384 = vpop.f32.mrf.mxu0
  %v385 = vadd.f32 0.0, %v384
  %386 = vmatmul.bf16.gmra.mxu0 %v212
  %v387 = vpop.f32.mrf.mxu0
  %v388 = vadd.f32 0.0, %v387
  %v389 = vpop.f32.mrf.mxu0
  %v390 = vadd.f32 0.0, %v389
  %391 = vmatmul.bf16.gmra.mxu0 %v214
  %v392 = vpop.f32.mrf.mxu0
  %v393 = vadd.f32 0.0, %v392
  %v394 = vpop.f32.mrf.mxu0
  %v395 = vadd.f32 0.0, %v394
  %396 = vmatmul.bf16.gmra.mxu0 %v216
  %v397 = vpop.f32.mrf.mxu0
  %v398 = vadd.f32 0.0, %v397
  %v399 = vpop.f32.mrf.mxu0
  %v400 = vadd.f32 0.0, %v399
  %401 = vmatmul.bf16.gmra.mxu0 %v218
  %v402 = vpop.f32.mrf.mxu0
  %v403 = vadd.f32 0.0, %v402
  %v404 = vpop.f32.mrf.mxu0
  %v405 = vadd.f32 0.0, %v404
  %406 = vmatmul.bf16.gmra.mxu0 %v220
  %v407 = vpop.f32.mrf.mxu0
  %v408 = vadd.f32 0.0, %v407
  %v409 = vpop.f32.mrf.mxu0
  %v410 = vadd.f32 0.0, %v409
  %411 = vmatmul.bf16.gmra.mxu0 %v222
  %v412 = vpop.f32.mrf.mxu0
  %v413 = vadd.f32 0.0, %v412
  %v414 = vpop.f32.mrf.mxu0
  %v415 = vadd.f32 0.0, %v414
  %416 = vmatmul.bf16.gmra.mxu0 %v224
  %v417 = vpop.f32.mrf.mxu0
  %v418 = vadd.f32 0.0, %v417
  %v419 = vpop.f32.mrf.mxu0
  %420 = vdwg.mxu0
  %421 = vmatpush.bf16.msra.mxu0 %v331
  %422 = vmatpush.bf16.msra.mxu0 %v330
  %423 = vmatpush.bf16.msra.mxu0 %v329
  %424 = vmatpush.bf16.msra.mxu0 %v328
  %425 = vmatpush.bf16.msra.mxu0 %v327
  %426 = vmatpush.bf16.msra.mxu0 %v326
  %427 = vmatpush.bf16.msra.mxu0 %v325
  %428 = vmatpush.bf16.msra.mxu0 %v324
  %429 = vmatmul.bf16.gmra.mxu0 %v201
  %v430 = vpop.f32.mrf.mxu0
  %v431 = vadd.f32 %v358, %v430
  %v432 = vpop.f32.mrf.mxu0
  %v433 = vadd.f32 %v360, %v432
  %434 = vmatmul.bf16.gmra.mxu0 %v203
  %v435 = vpop.f32.mrf.mxu0
  %v436 = vadd.f32 %v363, %v435
  %v437 = vpop.f32.mrf.mxu0
  %v438 = vadd.f32 %v365, %v437
  %439 = vmatmul.bf16.gmra.mxu0 %v205
  %v440 = vpop.f32.mrf.mxu0
  %v441 = vadd.f32 %v368, %v440
  %v442 = vpop.f32.mrf.mxu0
  %v443 = vadd.f32 %v370, %v442
  %444 = vmatmul.bf16.gmra.mxu0 %v207
  %v445 = vpop.f32.mrf.mxu0
  %v446 = vadd.f32 %v373, %v445
  %v447 = vpop.f32.mrf.mxu0
  %v448 = vadd.f32 %v375, %v447
  %449 = vmatmul.bf16.gmra.mxu0 %v209
  %v450 = vpop.f32.mrf.mxu0
  %v451 = vadd.f32 %v378, %v450
  %v452 = vpop.f32.mrf.mxu0
  %v453 = vadd.f32 %v380, %v452
  %454 = vmatmul.bf16.gmra.mxu0 %v211
  %v455 = vpop.f32.mrf.mxu0
  %v456 = vadd.f32 %v383, %v455
  %v457 = vpop.f32.mrf.mxu0
  %v458 = vadd.f32 %v385, %v457
  %459 = vmatmul.bf16.gmra.mxu0 %v213
  %v460 = vpop.f32.mrf.mxu0
  %v461 = vadd.f32 %v388, %v460
  %v462 = vpop.f32.mrf.mxu0
  %v463 = vadd.f32 %v390, %v462
  %464 = vmatmul.bf16.gmra.mxu0 %v215
  %v465 = vpop.f32.mrf.mxu0
  %v466 = vadd.f32 %v393, %v465
  %v467 = vpop.f32.mrf.mxu0
  %v468 = vadd.f32 %v395, %v467
  %469 = vmatmul.bf16.gmra.mxu0 %v217
  %v470 = vpop.f32.mrf.mxu0
  %v471 = vadd.f32 %v398, %v470
  %v472 = vpop.f32.mrf.mxu0
  %v473 = vadd.f32 %v400, %v472
  %474 = vmatmul.bf16.gmra.mxu0 %v219
  %v475 = vpop.f32.mrf.mxu0
  %v476 = vadd.f32 %v403, %v475
  %v477 = vpop.f32.mrf.mxu0
  %v478 = vadd.f32 %v405, %v477
  %479 = vmatmul.bf16.gmra.mxu0 %v221
  %v480 = vpop.f32.mrf.mxu0
  %v481 = vadd.f32 %v408, %v480
  %v482 = vpop.f32.mrf.mxu0
  %v483 = vadd.f32 %v410, %v482
  %484 = vmatmul.bf16.gmra.mxu0 %v223
  %v485 = vpop.f32.mrf.mxu0
  %v486 = vadd.f32 %v413, %v485
  %v487 = vpop.f32.mrf.mxu0
  %v488 = vadd.f32 %v415, %v487
  %489 = vmatmul.bf16.gmra.mxu0 %v225
  %v490 = vpop.f32.mrf.mxu0
  %v491 = vadd.f32 %v418, %v490
  %v492 = vpop.f32.mrf.mxu0
  %493 = vdwg.mxu0
  %v494 = vadd.f32 %v43, %v431
  %v495 = vadd.f32 %v44, %v433
  %v496 = vadd.f32 %v45, %v436
  %v497 = vadd.f32 %v46, %v438
  %v498 = vadd.f32 %v47, %v441
  %v499 = vadd.f32 %v48, %v443
  %v500 = vadd.f32 %v49, %v446
  %v501 = vadd.f32 %v50, %v448
  %v502 = vadd.f32 %v51, %v451
  %v503 = vadd.f32 %v52, %v453
  %v504 = vadd.f32 %v53, %v456
  %v505 = vadd.f32 %v54, %v458
  %v506 = vadd.f32 %v55, %v461
  %v507 = vadd.f32 %v56, %v463
  %v508 = vadd.f32 %v57, %v466
  %v509 = vadd.f32 %v58, %v468
  %v510 = vadd.f32 %v59, %v471
  %v511 = vadd.f32 %v60, %v473
  %v512 = vadd.f32 %v61, %v476
  %v513 = vadd.f32 %v62, %v478
  %v514 = vadd.f32 %v63, %v481
  %v515 = vadd.f32 %v64, %v483
  %v516 = vadd.f32 %v65, %v486
  %v517 = vadd.f32 %v66, %v488
  %v518 = vadd.f32 %v67, %v491
  %519 = vst [vmem:[#allocation2] sm:$0xff] %v494
  %520 = vst [vmem:[#allocation2 + $0x8] sm:$0xff] %v495
  %521 = vst [vmem:[#allocation2 + $0x10] sm:$0xff] %v496
  %522 = vst [vmem:[#allocation2 + $0x18] sm:$0xff] %v497
  %523 = vst [vmem:[#allocation2 + $0x20] sm:$0xff] %v498
  %524 = vst [vmem:[#allocation2 + $0x28] sm:$0xff] %v499
  %525 = vst [vmem:[#allocation2 + $0x30] sm:$0xff] %v500
  %526 = vst [vmem:[#allocation2 + $0x38] sm:$0xff] %v501
  %527 = vst [vmem:[#allocation2 + $0x40] sm:$0xff] %v502
  %528 = vst [vmem:[#allocation2 + $0x48] sm:$0xff] %v503
  %529 = vst [vmem:[#allocation2 + $0x50] sm:$0xff] %v504
  %530 = vst [vmem:[#allocation2 + $0x58] sm:$0xff] %v505
  %531 = vst [vmem:[#allocation2 + $0x60] sm:$0xff] %v506
  %532 = vst [vmem:[#allocation2 + $0x68] sm:$0xff] %v507
  %533 = vst [vmem:[#allocation2 + $0x70] sm:$0xff] %v508
  %534 = vst [vmem:[#allocation2 + $0x78] sm:$0xff] %v509
  %535 = vst [vmem:[#allocation2 + $0x80] sm:$0xff] %v510
  %536 = vst [vmem:[#allocation2 + $0x88] sm:$0xff] %v511
  %537 = vst [vmem:[#allocation2 + $0x90] sm:$0xff] %v512
  %538 = vst [vmem:[#allocation2 + $0x98] sm:$0xff] %v513
  %539 = vst [vmem:[#allocation2 + $0xa0] sm:$0xff] %v514
  %540 = vst [vmem:[#allocation2 + $0xa8] sm:$0xff] %v515
  %541 = vst [vmem:[#allocation2 + $0xb0] sm:$0xff] %v516
  %542 = vst [vmem:[#allocation2 + $0xb8] sm:$0xff] %v517
  %543 = vst [vmem:[#allocation2 + $0xc0] sm:$0xff] %v518
  // Predicated region
  $region18: #{graph_convolution.3} parent=0 // pred_check
    %p544 = pneg %p14
  $region19: #{graph_convolution.3} parent=0 // pred_check_branch
    %546 = sbr.rel (%p544) target = $region21
  $region20: #{graph_convolution.3} parent=0 // pred_region
    %v547 = vld [vmem:[#allocation2] sm:$0xff]
    %v548 = vld [vmem:[#allocation2 + $0x8] sm:$0xff]
    %v549 = vld [vmem:[#allocation2 + $0x10] sm:$0xff]
    %v550 = vld [vmem:[#allocation2 + $0x18] sm:$0xff]
    %v551 = vld [vmem:[#allocation2 + $0x20] sm:$0xff]
    %v552 = vld [vmem:[#allocation2 + $0x28] sm:$0xff]
    %v553 = vld [vmem:[#allocation2 + $0x30] sm:$0xff]
    %v554 = vld [vmem:[#allocation2 + $0x38] sm:$0xff]
    %v555 = vld [vmem:[#allocation2 + $0x40] sm:$0xff]
    %v556 = vld [vmem:[#allocation2 + $0x48] sm:$0xff]
    %v557 = vld [vmem:[#allocation2 + $0x50] sm:$0xff]
    %v558 = vld [vmem:[#allocation2 + $0x58] sm:$0xff]
    %v559 = vld [vmem:[#allocation2 + $0x60] sm:$0xff]
    %v560 = vld [vmem:[#allocation2 + $0x68] sm:$0xff]
    %v561 = vld [vmem:[#allocation2 + $0x70] sm:$0xff]
    %v562 = vld [vmem:[#allocation2 + $0x78] sm:$0xff]
    %v563 = vld [vmem:[#allocation2 + $0x80] sm:$0xff]
    %v564 = vld [vmem:[#allocation2 + $0x88] sm:$0xff]
    %v565 = vld [vmem:[#allocation2 + $0x90] sm:$0xff]
    %v566 = vld [vmem:[#allocation2 + $0x98] sm:$0xff]
    %v567 = vld [vmem:[#allocation2 + $0xa0] sm:$0xff]
    %v568 = vld [vmem:[#allocation2 + $0xa8] sm:$0xff]
    %v569 = vld [vmem:[#allocation2 + $0xb0] sm:$0xff]
    %v570 = vld [vmem:[#allocation2 + $0xb8] sm:$0xff]
    %v571 = vld [vmem:[#allocation2 + $0xc0] sm:$0xff]
    %v572 = vld [vmem:[%s2] sm:$0x1]
    %v574 = vperm.slane %v572, 0
    %v576 = vadd.f32 %v547, %v574
    %v577 = vadd.f32 %v548, %v574
    %v578 = vadd.f32 %v549, %v574
    %v579 = vadd.f32 %v550, %v574
    %v580 = vadd.f32 %v551, %v574
    %v581 = vadd.f32 %v552, %v574
    %v582 = vadd.f32 %v553, %v574
    %v583 = vadd.f32 %v554, %v574
    %v584 = vadd.f32 %v555, %v574
    %v585 = vadd.f32 %v556, %v574
    %v586 = vadd.f32 %v557, %v574
    %v587 = vadd.f32 %v558, %v574
    %v588 = vadd.f32 %v559, %v574
    %v589 = vadd.f32 %v560, %v574
    %v590 = vadd.f32 %v561, %v574
    %v591 = vadd.f32 %v562, %v574
    %v592 = vadd.f32 %v563, %v574
    %v593 = vadd.f32 %v564, %v574
    %v594 = vadd.f32 %v565, %v574
    %v595 = vadd.f32 %v566, %v574
    %v596 = vadd.f32 %v567, %v574
    %v597 = vadd.f32 %v568, %v574
    %v598 = vadd.f32 %v569, %v574
    %v599 = vadd.f32 %v570, %v574
    %v600 = vadd.f32 %v571, %v574
    %601 = vst [vmem:[%s3] sm:$0xff] %v576
    %602 = vst [vmem:[%s3 + $0x8] sm:$0xff] %v577
    %603 = vst [vmem:[%s3 + $0x10] sm:$0xff] %v578
    %604 = vst [vmem:[%s3 + $0x18] sm:$0xff] %v579
    %605 = vst [vmem:[%s3 + $0x20] sm:$0xff] %v580
    %606 = vst [vmem:[%s3 + $0x28] sm:$0xff] %v581
    %607 = vst [vmem:[%s3 + $0x30] sm:$0xff] %v582
    %608 = vst [vmem:[%s3 + $0x38] sm:$0xff] %v583
    %609 = vst [vmem:[%s3 + $0x40] sm:$0xff] %v584
    %610 = vst [vmem:[%s3 + $0x48] sm:$0xff] %v585
    %611 = vst [vmem:[%s3 + $0x50] sm:$0xff] %v586
    %612 = vst [vmem:[%s3 + $0x58] sm:$0xff] %v587
    %613 = vst [vmem:[%s3 + $0x60] sm:$0xff] %v588
    %614 = vst [vmem:[%s3 + $0x68] sm:$0xff] %v589
    %615 = vst [vmem:[%s3 + $0x70] sm:$0xff] %v590
    %616 = vst [vmem:[%s3 + $0x78] sm:$0xff] %v591
    %617 = vst [vmem:[%s3 + $0x80] sm:$0xff] %v592
    %618 = vst [vmem:[%s3 + $0x88] sm:$0xff] %v593
    %619 = vst [vmem:[%s3 + $0x90] sm:$0xff] %v594
    %620 = vst [vmem:[%s3 + $0x98] sm:$0xff] %v595
    %621 = vst [vmem:[%s3 + $0xa0] sm:$0xff] %v596
    %622 = vst [vmem:[%s3 + $0xa8] sm:$0xff] %v597
    %623 = vst [vmem:[%s3 + $0xb0] sm:$0xff] %v598
    %624 = vst [vmem:[%s3 + $0xb8] sm:$0xff] %v599
    %625 = vst [vmem:[%s3 + $0xc0] sm:$0xff] %v600
  $region21: #{graph_convolution.3} parent=0 // pred_fallthru
    _
  // Predicated region
  $region22: #{graph_convolution.3} parent=0 // pred_check
    _
  $region23: #{graph_convolution.3} parent=0 // pred_check_branch
    %627 = sbr.rel (0) target = $region25
  $region24: #{graph_convolution.3} parent=0 // pred_region
    _
  $region25: #{graph_convolution.3} parent=0 // pred_fallthru
    _
  // Predicated region
  $region26: #{graph_convolution.3} parent=0 // pred_check
    _
  $region27: #{graph_convolution.3} parent=0 // pred_check_branch
    %629 = sbr.rel (0) target = $region29
  $region28: #{graph_convolution.3} parent=0 // pred_region
    _
  $region29: #{graph_convolution.3} parent=0 // pred_fallthru
    _

</llo_original>
